<compile_context>
chip_gen: v7x
topology: tpu7x:2x2x1
jax: 0.10.0
libtpu: 0.0.40
codegen_flags: <defaults>
</compile_context>

<pallas_src>
import jax
import jax.numpy as jnp
from jax import lax
from jax.experimental import pallas as pl
from jax.experimental.pallas import tpu as pltpu


def _round_up(x, m):
    return ((x + m - 1) // m) * m


# ---------------------------------------------------------------------------
# Path A: resident-table one-hot MXU gather (small / medium vocab).
# ---------------------------------------------------------------------------

def _embed_onehot_kernel(ids_ref, table_ref, out_ref):
    """One block of token embeddings via a one-hot @ table matmul on the MXU.

    ids_ref   : (TB, 1) int32  VMEM   token ids for this block
    table_ref : (V, D)         VMEM   full, unpadded table (native dtype)
    out_ref   : (TB, D)        VMEM   gathered embeddings (native dtype)
    """
    TB = out_ref.shape[0]
    V = table_ref.shape[0]

    ids = ids_ref[...]                                    # (TB, 1) int32
    col = lax.broadcasted_iota(jnp.int32, (TB, V), 1)     # (TB, V)  int32
    # Single int32 compare + single cast (VALU-minimal, per v5e feedback).
    # Ids outside [0, V) select no row -> zero output row.
    one_hot = (col == ids).astype(table_ref.dtype)        # (TB, V)

    out_ref[...] = jnp.dot(
        one_hot, table_ref[...], preferred_element_type=jnp.float32
    ).astype(out_ref.dtype)


def _embed_onehot(weight, flat_ids, *, token_block):
    V, D = weight.shape
    N = flat_ids.shape[0]
    itemsize = jnp.dtype(weight.dtype).itemsize

    # Cap TB so the (TB, V) int32/one-hot temporaries stay a few MiB.
    onehot_budget = 4 << 20
    tb_cap = max(8, (onehot_budget // (_round_up(V, 128) * 4)) // 8 * 8)
    TB = min(token_block, tb_cap)
    if N < TB:
        TB = _round_up(max(N, 1), 8)
    N_pad = _round_up(N, TB)

    if N_pad != N:
        flat_ids = jnp.pad(flat_ids, (0, N_pad - N))
    ids2d = flat_ids.reshape(N_pad, 1)

    vmem_need = (
        V * D * itemsize                   # resident table (single-buffered)
        + 2 * TB * 4                       # ids blocks (double-buffered)
        + 2 * TB * D * itemsize            # out blocks (double-buffered)
        + 2 * TB * _round_up(V, 128) * 4   # iota + one-hot temporaries
        + (2 << 20)                        # headroom
    )
    vmem_limit = int(min(max(vmem_need, 32 << 20), 64 << 20))

    out = pl.pallas_call(
        _embed_onehot_kernel,
        out_shape=jax.ShapeDtypeStruct((N_pad, D), weight.dtype),
        grid_spec=pltpu.PrefetchScalarGridSpec(
            num_scalar_prefetch=0,
            grid=(N_pad // TB,),
            in_specs=[
                pl.BlockSpec((TB, 1), lambda i: (i, 0)),      # token-id block
                # Full, unpadded table; constant index_map -> DMA'd once and
                # kept resident.  Single-buffered: the default double buffer
                # for a never-refetched block is wasted VMEM.
                # (If pre-padding the table once at init, pad V/D to x256 on
                #  v6e/v7x for full MXU passes; not done per-call here.)
                pl.BlockSpec((V, D), lambda i: (0, 0),
                             pipeline_mode=pl.Buffered(1)),
            ],
            out_specs=pl.BlockSpec((TB, D), lambda i: (i, 0)),
        ),
        compiler_params=pltpu.CompilerParams(
            # NOTE(v7x): "parallel" shards token blocks across both TCs, which
            # duplicates the resident table (2x VMEM / 2x table HBM read); for
            # tables marginal against 64 MiB/TC use the gather path instead.
            dimension_semantics=("parallel",),
            vmem_limit_bytes=vmem_limit,
        ),
    )(ids2d, weight)

    return out[:N] if N_pad != N else out


# ---------------------------------------------------------------------------
# Path B: large-vocab DMA row gather (table stays in HBM).
# ---------------------------------------------------------------------------

def _embed_gather_kernel(ids_ref, table_hbm, out_ref, buf, sem):
    """Per-row gather with manually double-buffered HBM->VMEM DMAs.

    ids_ref   : (N_pad,) int32  SMEM  scalar-prefetched token ids
    table_hbm : (V, D)          HBM   (memory_space=pl.ANY)
    out_ref   : (TB, D)         VMEM  output block for this grid step
    buf       : (2, 1, D)       VMEM  double buffer
    sem       : (2,)            DMA semaphores
    """
    TB = out_ref.shape[0]
    V = table_hbm.shape[0]
    base = pl.program_id(0) * TB

    def start(t, slot):
        # Clamp to avoid OOB DMA for bad ids (torch nn.Embedding would raise).
        row = jnp.clip(ids_ref[base + t], 0, V - 1)
        pltpu.make_async_copy(
            table_hbm.at[pl.ds(row, 1), :], buf.at[slot], sem.at[slot]
        ).start()

    start(0, 0)

    def body(t, carry):
        slot = lax.rem(t, 2)
        pltpu.make_async_copy(
            table_hbm.at[pl.ds(0, 1), :], buf.at[slot], sem.at[slot]
        ).wait()

        @pl.when(t + 1 < TB)
        def _():
            start(t + 1, 1 - slot)

        out_ref[pl.ds(t, 1), :] = buf[slot]
        return carry

    lax.fori_loop(0, TB, body, 0)


def _embed_gather(weight, flat_ids, *, token_block):
    V, D = weight.shape
    N = flat_ids.shape[0]
    itemsize = jnp.dtype(weight.dtype).itemsize

    TB = token_block
    if N < TB:
        TB = _round_up(max(N, 1), 8)
    N_pad = _round_up(N, TB)
    if N_pad != N:
        flat_ids = jnp.pad(flat_ids, (0, N_pad - N))

    vmem_need = 2 * TB * D * itemsize + 2 * D * itemsize + (2 << 20)
    vmem_limit = int(min(max(vmem_need, 32 << 20), 64 << 20))

    out = pl.pallas_call(
        _embed_gather_kernel,
        out_shape=jax.ShapeDtypeStruct((N_pad, D), weight.dtype),
        grid_spec=pltpu.PrefetchScalarGridSpec(
            num_scalar_prefetch=1,                        # ids -> SMEM
            grid=(N_pad // TB,),
            in_specs=[pl.BlockSpec(memory_space=pl.ANY)],  # table stays in HBM
            out_specs=pl.BlockSpec((TB, D), lambda i, ids: (i, 0)),
            scratch_shapes=[
                pltpu.VMEM((2, 1, D), weight.dtype),
                pltpu.SemaphoreType.DMA((2,)),
            ],
        ),
        compiler_params=pltpu.CompilerParams(
            dimension_semantics=("parallel",),
            vmem_limit_bytes=vmem_limit,
        ),
    )(flat_ids, weight)

    return out[:N] if N_pad != N else out


# ---------------------------------------------------------------------------
# Public wrapper == Embed.forward
# ---------------------------------------------------------------------------

# Cut over to the HBM gather path when the table is too big to keep resident
# (conservative budget across v5e scoped default / v7x 64 MiB per TC) or the
# one-hot's O(V) MXU/VALU cost stops paying off.
_RESIDENT_TABLE_BYTES = 24 << 20
_ONEHOT_MAX_VOCAB = 4096


def embed_forward(weight, input_ids, *, token_block=512):
    """Equivalent of Embed.forward: weight[input_ids], in weight's native dtype."""
    V, D = weight.shape
    orig_shape = input_ids.shape
    flat = input_ids.reshape(-1).astype(jnp.int32)

    table_bytes = V * D * jnp.dtype(weight.dtype).itemsize
    if table_bytes > _RESIDENT_TABLE_BYTES or V > _ONEHOT_MAX_VOCAB:
        out = _embed_gather(weight, flat, token_block=token_block)
    else:
        out = _embed_onehot(weight, flat, token_block=token_block)

    return out.reshape(*orig_shape, D)


# ------------------------- pure-JAX reference check -------------------------

def _ref_embed(weight, input_ids):
    return jnp.take(weight, input_ids.astype(jnp.int32), axis=0)


# ----------------------------------- main ------------------------------------

if __name__ == "__main__":
    # Small shapes consistent with the module: vocab=100, ninp=32, ids (seq=8, batch=2).
    ntoken, ninp = 100, 32
    seq, batch = 8, 2

    key_w, key_i = jax.random.split(jax.random.PRNGKey(0))

    # nn.Embedding weight.  The word-vector file loading / <pad>-row zeroing in
    # Embed.__init__ is init-time parameter setup, not forward math.
    weight = jax.random.normal(key_w, (ntoken, ninp), jnp.float32)
    input_ids = jax.random.randint(key_i, (seq, batch), 0, ntoken, dtype=jnp.int32)

    out = jax.block_until_ready(embed_forward(weight, input_ids))
    ref = jax.block_until_ready(_ref_embed(weight, input_ids))

    assert out.shape == (seq, batch, ninp), out.shape
    assert out.dtype == weight.dtype, out.dtype
    assert jnp.max(jnp.abs(out - ref)) < 1e-6, float(jnp.max(jnp.abs(out - ref)))

    print("KERNEL_OK")
</pallas_src>

<mosaic_0001>
module attributes {stable_mosaic.version = 11 : i64} {
  func.func @_embed_onehot_kernel(%arg0: i32, %arg1: memref<16x1xi32, #tpu.memory_space<vmem>>, %arg2: memref<100x32xf32, #tpu.memory_space<vmem>>, %arg3: memref<16x32xf32, #tpu.memory_space<vmem>>) attributes {dimension_semantics = [#tpu.dimension_semantics<parallel>], iteration_bounds = array<i64: 1>, scalar_prefetch = 0 : i64, scratch_operands = 0 : i64, tpu.core_type = #tpu.core_type<tc>, window_params = [{transform_indices = @transform_0, window_bounds = array<i64: 16, 1>}, {pipeline_mode = #tpu.pipeline_mode<synchronous>, transform_indices = @transform_1, window_bounds = array<i64: 100, 32>}, {transform_indices = @transform_2, window_bounds = array<i64: 16, 32>}]} {
    %c0 = arith.constant 0 : index
    %c0_0 = arith.constant 0 : index
    %0 = vector.load %arg1[%c0, %c0_0] : memref<16x1xi32, #tpu.memory_space<vmem>>, vector<16x1xi32>
    %1 = tpu.iota {dimensions = array<i32: 1>} : vector<16x100xi32>
    %2 = vector.broadcast %0 : vector<16x1xi32> to vector<16x100xi32>
    %3 = arith.cmpi eq, %1, %2 : vector<16x100xi32>
    %4 = arith.extui %3 : vector<16x100xi1> to vector<16x100xi32>
    %5 = arith.sitofp %4 : vector<16x100xi32> to vector<16x100xf32>
    %c0_1 = arith.constant 0 : index
    %c0_2 = arith.constant 0 : index
    %6 = vector.load %arg2[%c0_1, %c0_2] : memref<100x32xf32, #tpu.memory_space<vmem>>, vector<100x32xf32>
    %cst = arith.constant dense<0.000000e+00> : vector<16x32xf32>
    %7 = tpu.matmul %5, %6, %cst {dimension_numbers = #tpu.dot_dimension_numbers<[1], [0], [0], [1], [0, 0, 1, 1], [], []>} : vector<16x100xf32>, vector<100x32xf32>, vector<16x32xf32> -> vector<16x32xf32>
    %c0_3 = arith.constant 0 : index
    %c0_4 = arith.constant 0 : index
    %8 = vector.load %arg3[%c0_3, %c0_4] : memref<16x32xf32, #tpu.memory_space<vmem>>, vector<16x32xf32>
    tpu.vector_store %arg3[%c0_3, %c0_4], %7 {strides = array<i32>} : memref<16x32xf32, #tpu.memory_space<vmem>>, vector<16x32xf32>,
    return
  }
  func.func @transform_0(%arg0: i32) -> (i32, i32) {
    %c0_i32 = arith.constant 0 : i32
    %c0_i32_0 = arith.constant 0 : i32
    return %arg0, %c0_i32 : i32, i32
  }
  func.func @transform_1(%arg0: i32) -> (i32, i32) {
    %c0_i32 = arith.constant 0 : i32
    %c0_i32_0 = arith.constant 0 : i32
    %c0_i32_1 = arith.constant 0 : i32
    return %c0_i32, %c0_i32_0 : i32, i32
  }
  func.func @transform_2(%arg0: i32) -> (i32, i32) {
    %c0_i32 = arith.constant 0 : i32
    %c0_i32_0 = arith.constant 0 : i32
    return %arg0, %c0_i32 : i32, i32
  }
}

</mosaic_0001>

<llo_original>
// kernel: tpu_custom_call.1
$region0: #{tpu_custom_call.1}
  #allocation0 [shape = 'u32[]', space=smem, size = 0x4, offset = 0x4, fixed_abs, tag = 'smem constant byte address 0x4 - core index']
  #allocation1 [shape = 'u32[144,128]{1,0:T(1,128)}', space=vmem, size = 0x12000, scoped, tag = 'internal scratch']
  %s0 = inlined_call_operand.vmem [shape: s32[16,1], index: 0, kind: input, shape index: {}]
  %s1 = inlined_call_operand.vmem [shape: f32[100,32], index: 1, kind: input, shape index: {}]
  %s2 = inlined_call_operand.hbm [shape: f32[16,32], index: 2, kind: output, shape index: {}]
  %s3 = sld [smem:[#allocation0]]
  $region18: #{tpu_custom_call.1} parent=0
    _
  %s5 = ssub.s32 1, %s3
  %s6 = scalar_select 0, %s5, %s3
  $region1: #{tpu_custom_call.1} parent=0
    #allocation2 [shape = 'u8[8192]{0}', space=vmem, size = 0x2000, scoped, tag = 'output window, operand 0, single buffered']
    #allocation3 [shape = 's32[1]{0}', space=sflag, size = 0x4, scoped, tag = 'scoped memory for tpu_custom_call.1']
    %7 = vsyncpa [#allocation3], 0
    // Predicated region
    $region2: #{tpu_custom_call.1} parent=1 // pred_check
      _
    $region3: #{tpu_custom_call.1} parent=1 // pred_check_branch
      %9 = sbr.rel (0) target = $region5
    $region4: #{tpu_custom_call.1} parent=1 // pred_region
      _
    $region5: #{tpu_custom_call.1} parent=1 // pred_fallthru
      _
    // Predicated region
    $region6: #{tpu_custom_call.1} parent=1 // pred_check
      _
    $region7: #{tpu_custom_call.1} parent=1 // pred_check_branch
      %11 = sbr.rel (0) target = $region9
    $region8: #{tpu_custom_call.1} parent=1 // pred_region
      _
    $region9: #{tpu_custom_call.1} parent=1 // pred_fallthru
      _
    %v12 = vld [vmem:[%s0] sm:$0xff]
    %v13 = vld [vmem:[%s0 + $0x8] sm:$0xff]
    %v14 = vlaneseq
    %v15 = vand.u32 %v14, 127
    %16 = vset.pattern.permute.xlu0 0
    %17 = vperm.xlu0 %16, %v12
    %v18 = vpop.permute.xlu0 %17
    %19 = vset.pattern.permute.xlu0 0
    %20 = vperm.xlu0 %19, %v13
    %v21 = vpop.permute.xlu0 %20
    %vm22 = vcmp.eq.s32.totalorder %v15, %v18
    %vm23 = vcmp.eq.s32.totalorder %v15, %v21
    %v24 = vsel %vm22, 1, 0
    %v25 = vsel %vm23, 1, 0
    %v26 = vcvt.s32.f32 %v24
    %v27 = vcvt.s32.f32 %v25
    %v28 = vld [vmem:[%s1] sm:$0xff]
    %v29 = vld [vmem:[%s1 + $0x8] sm:$0xff]
    %v30 = vld [vmem:[%s1 + $0x10] sm:$0xff]
    %v31 = vld [vmem:[%s1 + $0x18] sm:$0xff]
    %v32 = vld [vmem:[%s1 + $0x20] sm:$0xff]
    %v33 = vld [vmem:[%s1 + $0x28] sm:$0xff]
    %v34 = vld [vmem:[%s1 + $0x30] sm:$0xff]
    %v35 = vld [vmem:[%s1 + $0x38] sm:$0xff]
    %v36 = vld [vmem:[%s1 + $0x40] sm:$0xff]
    %v37 = vld [vmem:[%s1 + $0x48] sm:$0xff]
    %v38 = vld [vmem:[%s1 + $0x50] sm:$0xff]
    %v39 = vld [vmem:[%s1 + $0x58] sm:$0xff]
    %v40 = vld [vmem:[%s1 + $0x60] sm:$0xf]
    %vm41 = vcmask 818176
    %v43 = vsel %vm41, %v26, 0
    %v46 = vsel %vm41, %v27, 0
    %vm48 = vcmask 1043456
    %v50 = vsel %vm48, %v40, 0
    %52 = vmatprep.subr.mxu0 0.0
    %53 = vmatpush1.msra.mxu0 %v28
    %54 = vmatprep.subr.mxu0 0.0
    %55 = vmatpush1.msra.mxu0 %v29
    %56 = vmatprep.subr.mxu0 0.0
    %57 = vmatpush1.msra.mxu0 %v30
    %58 = vmatprep.subr.mxu0 0.0
    %59 = vmatpush1.msra.mxu0 %v31
    %60 = vmatprep.subr.mxu0 0.0
    %61 = vmatpush1.msra.mxu0 %v32
    %62 = vmatprep.subr.mxu0 0.0
    %63 = vmatpush1.msra.mxu0 %v33
    %64 = vmatprep.subr.mxu0 0.0
    %65 = vmatpush1.msra.mxu0 %v34
    %66 = vmatprep.subr.mxu0 0.0
    %67 = vmatpush1.msra.mxu0 %v35
    %68 = vmatprep.subr.mxu0 0.0
    %69 = vmatpush1.msra.mxu0 %v36
    %70 = vmatprep.subr.mxu0 0.0
    %71 = vmatpush1.msra.mxu0 %v37
    %72 = vmatprep.subr.mxu0 0.0
    %73 = vmatpush1.msra.mxu0 %v38
    %74 = vmatprep.subr.mxu0 0.0
    %75 = vmatpush1.msra.mxu0 %v39
    %76 = vmatprep.subr.mxu0 0.0
    %77 = vmatpush1.msra.mxu0 %v50
    %78 = vmatprep.subr.mxu0 0.0
    %79 = vmatpush1.msra.mxu0 0.0
    %80 = vmatprep.subr.mxu0 0.0
    %81 = vmatpush1.msra.mxu0 0.0
    %82 = vmatprep.subr.mxu0 0.0
    %83 = vmatpush1.msra.mxu0 0.0
    %84 = vmatprep.subr.mxu0 0.0
    %85 = vmatpush1.msra.mxu0 0.0
    %86 = vmatprep.subr.mxu0 0.0
    %87 = vmatpush1.msra.mxu0 0.0
    %88 = vmatprep.subr.mxu0 0.0
    %89 = vmatpush1.msra.mxu0 0.0
    %90 = vmatprep.subr.mxu0 0.0
    %91 = vmatpush1.msra.mxu0 0.0
    %92 = vmatprep.subr.mxu0 0.0
    %93 = vmatpush1.msra.mxu0 0.0
    %94 = vmatprep.subr.mxu0 0.0
    %95 = vmatpush1.msra.mxu0 0.0
    %96 = vmatprep.subr.mxu0 0.0
    %97 = vmatpush1.msra.mxu0 0.0
    %98 = vmatprep.subr.mxu0 0.0
    %99 = vmatpush1.msra.mxu0 0.0
    %100 = vmatprep.subr.mxu0 0.0
    %101 = vmatpush1.msra.mxu0 0.0
    %102 = vmatprep.subr.mxu0 0.0
    %103 = vmatpush1.msra.mxu0 0.0
    %104 = vmatprep.subr.mxu0 0.0
    %105 = vmatpush1.msra.mxu0 0.0
    %106 = vmatprep.subr.mxu0 0.0
    %107 = vmatpush1.msra.mxu0 0.0
    %108 = vmatprep.subr.mxu0 0.0
    %109 = vmatpush1.msra.mxu0 0.0
    %110 = vmatprep.subr.mxu0 0.0
    %111 = vmatpush1.msra.mxu0 0.0
    %112 = vmatprep.subr.mxu0 0.0
    %113 = vmatpush1.msra.mxu0 0.0
    %114 = vmatprep.subr.mxu0 0.0
    %115 = vmatpush1.msra.mxu0 0.0
    %116 = vmatprep.mubr.f32.mxu0 0.0
    %117 = vmatmul.mubr.f32.gmra.mrb[0].mxu0 %v43
    %v118 = vpop.f32.mrb[0].mxu0
    %v119 = vadd.f32 0.0, %v118
    %v120 = vpop.f32.mrb[0].mxu0
    %121 = vmatprep.mubr.f32.mxu0 0.0
    %122 = vmatmul.mubr.f32.gmra.mrb[0].mxu0 %v46
    %v123 = vpop.f32.mrb[0].mxu0
    %v124 = vadd.f32 0.0, %v123
    %v125 = vpop.f32.mrb[0].mxu0
    %126 = vdwg.mxu0
    %vm127 = vcmask 261120
    %128 = vst.msk [vmem:[#allocation2] sm:$0xff] %vm127, %v119
    %129 = vst.msk [vmem:[#allocation2 + $0x8] sm:$0xff] %vm127, %v124
    // Predicated region
    $region10: #{tpu_custom_call.1} parent=1 // pred_check
      _
    $region11: #{tpu_custom_call.1} parent=1 // pred_check_branch
      %131 = sbr.rel (0) target = $region13
    $region12: #{tpu_custom_call.1} parent=1 // pred_region
      %s133 = ssub.s32 256, 256
      %134 = vsyncadd [#allocation3], %s133
      %s135 = sshll.u32 [#allocation2], 4
      %s136 = int_to_ptr.vmem [resolvable:$true] %s135
      %141 = dma.vmem_to_hbm [thread:$0]  %s136, 256, %s2, [#allocation3], 128, 128, 8
    $region13: #{tpu_custom_call.1} parent=1 // pred_fallthru
      _
    // Predicated region
    $region14: #{tpu_custom_call.1} parent=1 // pred_check
      _
    $region15: #{tpu_custom_call.1} parent=1 // pred_check_branch
      %143 = sbr.rel (0) target = $region17
    $region16: #{tpu_custom_call.1} parent=1 // pred_region
      %144 = dma.done [#allocation3], 256
    $region17: #{tpu_custom_call.1} parent=1 // pred_fallthru
      _
    %145 = vsyncpa [#allocation3], 1

</llo_original>
